<compile_context>
chip_gen: v5e
topology: v5e:2x2
jax: 0.10.0
libtpu: 0.0.40
codegen_flags: <defaults>
</compile_context>

<pallas_src>
import jax
import jax.numpy as jnp
from jax.experimental import pallas as pl
from jax.experimental.pallas import tpu as pltpu


def _round_up(x, m):
    return ((x + m - 1) // m) * m


def _cdiv(a, b):
    return -(-a // b)


def _pad_axis(x, axis, target):
    pad = target - x.shape[axis]
    if pad <= 0:
        return x
    widths = [(0, 0)] * x.ndim
    widths[axis] = (0, pad)
    return jnp.pad(x, widths)


def actor_forward_kernel(state_ref,
                         w1_ref, b1_ref,
                         w2_ref, b2_ref,
                         wh_ref, bh_ref,
                         lo_ref, hi_ref,
                         out_ref):
    x = state_ref[...]

    # hidden layer 1: Linear + ReLU (f32 accumulate / f32 elementwise)
    h = jnp.dot(x, w1_ref[...], preferred_element_type=jnp.float32) + b1_ref[...]
    h = jnp.maximum(h, 0.0)

    # hidden layer 2: Linear + ReLU
    h = jnp.dot(h.astype(w2_ref.dtype), w2_ref[...],
                preferred_element_type=jnp.float32) + b2_ref[...]
    h = jnp.maximum(h, 0.0)

    # merged head: [ mean | log_std ]  (single matmul, N = 2A)
    head = jnp.dot(h.astype(wh_ref.dtype), wh_ref[...],
                   preferred_element_type=jnp.float32) + bh_ref[...]

    # per-column clamp: mean columns have (-inf, +inf) bounds, log_std columns
    # have (log_std_min, log_std_max) -> two broadcast min/max, no iota/mask.
    head = jnp.minimum(jnp.maximum(head, lo_ref[...]), hi_ref[...])

    out_ref[...] = head.astype(out_ref.dtype)


def actor_forward(state, params, *, log_std_min=-20.0, log_std_max=2.0,
                  block_b=1024, operand_dtype=None):
    """Fused ActorNetwork.forward.  Returns (mean, log_std)."""
    (w1, b1), (w2, b2), (wm, bm), (wls, bls) = params
    B, I = state.shape
    H1 = w1.shape[1]
    H2 = w2.shape[1]
    A = wm.shape[1]
    Ah = 2 * A

    # --- lane-pad hidden widths to multiples of 128 (math stays exact) ------
    H1p = _round_up(H1, 128)
    H2p = _round_up(H2, 128)
    w1p = _pad_axis(w1, 1, H1p)
    b1p = _pad_axis(b1, 1, H1p)
    w2p = _pad_axis(_pad_axis(w2, 0, H1p), 1, H2p)
    b2p = _pad_axis(b2, 1, H2p)
    head_w = _pad_axis(jnp.concatenate([wm, wls], axis=1), 0, H2p)   # (H2p, 2A)
    head_b = jnp.concatenate([bm, bls], axis=1)                      # (1,   2A)

    # --- per-column clamp bounds (resident rows) -----------------------------
    lo = jnp.concatenate([jnp.full((1, A), -jnp.inf, jnp.float32),
                          jnp.full((1, A), log_std_min, jnp.float32)], axis=1)
    hi = jnp.concatenate([jnp.full((1, A), jnp.inf, jnp.float32),
                          jnp.full((1, A), log_std_max, jnp.float32)], axis=1)

    # --- optional bf16 matmul operands (f32 accumulation in-kernel) ---------
    if operand_dtype is not None:
        state = state.astype(operand_dtype)
        w1p = w1p.astype(operand_dtype)
        w2p = w2p.astype(operand_dtype)
        head_w = head_w.astype(operand_dtype)

    # --- batch tiling: minimal padding; >=2 grid steps for v7x megacore -----
    n_tiles = max(1, _cdiv(B, block_b))
    TB = _round_up(_cdiv(B, n_tiles), 8)
    if n_tiles == 1 and TB >= 16:
        TB = _round_up(_cdiv(TB, 2), 8)      # split so both TCs get work (v7x)
    n_tiles = _cdiv(B, TB)
    B_pad = n_tiles * TB
    state_p = state if B_pad == B else jnp.pad(state, ((0, B_pad - B), (0, 0)))

    # --- BlockSpecs: state/output walk the batch grid; params stay resident -
    # TODO(synk): for production-sized weights (>=512x512), consider
    # pipeline_mode=pl.Buffered(1) on the resident specs to drop the second
    # pipeline buffer; negligible at these sizes.
    def resident(arr):
        return pl.BlockSpec(arr.shape, lambda i: (0, 0))

    in_specs = [
        pl.BlockSpec((TB, I), lambda i: (i, 0)),         # state tile
        resident(w1p), resident(b1p),
        resident(w2p), resident(b2p),
        resident(head_w), resident(head_b),
        resident(lo), resident(hi),
    ]
    out_specs = pl.BlockSpec((TB, Ah), lambda i: (i, 0))

    # --- advisory cost estimate (real widths, no fake padded-lane work) -----
    def nbytes(a):
        return a.size * a.dtype.itemsize

    cost = pl.CostEstimate(
        flops=int(2 * B_pad * (I * H1p + H1p * H2p + H2p * Ah)),
        transcendentals=0,
        bytes_accessed=int(nbytes(state_p) + nbytes(w1p) + nbytes(b1p)
                           + nbytes(w2p) + nbytes(b2p) + nbytes(head_w)
                           + nbytes(head_b) + nbytes(lo) + nbytes(hi)
                           + B_pad * Ah * 4))

    out = pl.pallas_call(
        actor_forward_kernel,
        out_shape=jax.ShapeDtypeStruct((B_pad, Ah), jnp.float32),
        grid=(n_tiles,),
        in_specs=in_specs,
        out_specs=out_specs,
        compiler_params=pltpu.CompilerParams(
            dimension_semantics=("parallel",)),   # batch axis -> 2 TCs on v7x
        cost_estimate=cost,
    )(state_p, w1p, b1p, w2p, b2p, head_w, head_b, lo, hi)

    mean = out[:B, :A]
    log_std = out[:B, A:Ah]
    return mean, log_std


def init_actor_params(key, num_inputs, num_actions, arch,
                      init_w_bounds=0.003, init_b_value=0.1):
    """Deterministic synthetic init mirroring ActorNetwork.__init__ shapes.

    Hidden layers: fanin-uniform weights, bias = 0.1 (layers after the first,
    as in Network.init_hidden_layers); heads: uniform in [-0.003, 0.003].
    Weights are stored as (in, out) (transposed vs. PyTorch's (out, in)).
    """
    keys = jax.random.split(key, 8)
    params = []
    in_dim = num_inputs
    for li, out_dim in enumerate(arch):
        bound = 1.0 / jnp.sqrt(jnp.float32(in_dim))
        w = jax.random.uniform(keys[2 * li], (in_dim, out_dim),
                               minval=-bound, maxval=bound, dtype=jnp.float32)
        if li == 0:
            b = jax.random.uniform(keys[2 * li + 1], (1, out_dim),
                                   minval=-bound, maxval=bound,
                                   dtype=jnp.float32)
        else:
            b = jnp.full((1, out_dim), init_b_value, dtype=jnp.float32)
        params.append((w, b))
        in_dim = out_dim

    # mean / log_std heads
    for hi in range(2):
        w = jax.random.uniform(keys[4 + 2 * hi], (in_dim, num_actions),
                               minval=-init_w_bounds, maxval=init_w_bounds,
                               dtype=jnp.float32)
        b = jax.random.uniform(keys[5 + 2 * hi], (1, num_actions),
                               minval=-init_w_bounds, maxval=init_w_bounds,
                               dtype=jnp.float32)
        params.append((w, b))
    return tuple(params)


def actor_forward_ref(state, params, *, log_std_min=-20.0, log_std_max=2.0):
    (w1, b1), (w2, b2), (wm, bm), (wls, bls) = params
    h = jnp.maximum(state @ w1 + b1, 0.0)
    h = jnp.maximum(h @ w2 + b2, 0.0)
    mean = h @ wm + bm
    log_std = jnp.clip(h @ wls + bls, log_std_min, log_std_max)
    return mean, log_std


if __name__ == "__main__":
    key = jax.random.PRNGKey(0)
    num_inputs = 16
    num_actions = 8
    arch = [32, 32]
    batch = 4

    k_state, k_params = jax.random.split(key)
    state = jax.random.normal(k_state, (batch, num_inputs), dtype=jnp.float32)
    params = init_actor_params(k_params, num_inputs, num_actions, arch)

    mean, log_std = actor_forward(state, params)
    jax.block_until_ready((mean, log_std))

    mean_ref, log_std_ref = actor_forward_ref(state, params)
    assert mean.shape == (batch, num_actions)
    assert log_std.shape == (batch, num_actions)
    assert jnp.allclose(mean, mean_ref, atol=1e-5, rtol=1e-5)
    assert jnp.allclose(log_std, log_std_ref, atol=1e-5, rtol=1e-5)

    # Multi-tile batch: improved TB selection gives 3 x 104 rows for B=300
    # (was 3 x 128 = 28% padding), grid > 1 exercises the pipeline.
    big_state = jax.random.normal(k_state, (300, num_inputs), dtype=jnp.float32)
    m2, ls2 = actor_forward(big_state, params, block_b=128)
    jax.block_until_ready((m2, ls2))
    m2_ref, ls2_ref = actor_forward_ref(big_state, params)
    assert jnp.allclose(m2, m2_ref, atol=1e-5, rtol=1e-5)
    assert jnp.allclose(ls2, ls2_ref, atol=1e-5, rtol=1e-5)

    # bf16 matmul-operand path (f32 accumulation); also exercises the
    # single-tile -> two-tile split so the parallel axis has >= 2 steps.
    m3, ls3 = actor_forward(big_state, params, operand_dtype=jnp.bfloat16)
    jax.block_until_ready((m3, ls3))
    assert m3.shape == m2_ref.shape and ls3.shape == ls2_ref.shape
    assert float(jnp.max(jnp.abs(m3 - m2_ref))) < 5e-2
    assert float(jnp.max(jnp.abs(ls3 - ls2_ref))) < 5e-2

    # TODO(synk): ActorNetwork.sample() uses Normal.rsample (stochastic) and is
    # intentionally left in plain JAX / out of scope; forward() is fully fused.
    print("KERNEL_OK")
</pallas_src>

<mosaic_0001>
module attributes {stable_mosaic.version = 11 : i64} {
  func.func @actor_forward_kernel(%arg0: i32, %arg1: memref<8x16xf32, #tpu.memory_space<vmem>>, %arg2: memref<16x128xf32, #tpu.memory_space<vmem>>, %arg3: memref<1x128xf32, #tpu.memory_space<vmem>>, %arg4: memref<128x128xf32, #tpu.memory_space<vmem>>, %arg5: memref<1x128xf32, #tpu.memory_space<vmem>>, %arg6: memref<128x16xf32, #tpu.memory_space<vmem>>, %arg7: memref<1x16xf32, #tpu.memory_space<vmem>>, %arg8: memref<1x16xf32, #tpu.memory_space<vmem>>, %arg9: memref<1x16xf32, #tpu.memory_space<vmem>>, %arg10: memref<8x16xf32, #tpu.memory_space<vmem>>) attributes {dimension_semantics = [#tpu.dimension_semantics<parallel>], iteration_bounds = array<i64: 1>, scalar_prefetch = 0 : i64, scratch_operands = 0 : i64, tpu.core_type = #tpu.core_type<tc>, window_params = [{transform_indices = @transform_0, window_bounds = array<i64: 8, 16>}, {pipeline_mode = #tpu.pipeline_mode<synchronous>, transform_indices = @transform_1, window_bounds = array<i64: 16, 128>}, {pipeline_mode = #tpu.pipeline_mode<synchronous>, transform_indices = @transform_2, window_bounds = array<i64: 1, 128>}, {pipeline_mode = #tpu.pipeline_mode<synchronous>, transform_indices = @transform_3, window_bounds = array<i64: 128, 128>}, {pipeline_mode = #tpu.pipeline_mode<synchronous>, transform_indices = @transform_4, window_bounds = array<i64: 1, 128>}, {pipeline_mode = #tpu.pipeline_mode<synchronous>, transform_indices = @transform_5, window_bounds = array<i64: 128, 16>}, {pipeline_mode = #tpu.pipeline_mode<synchronous>, transform_indices = @transform_6, window_bounds = array<i64: 1, 16>}, {pipeline_mode = #tpu.pipeline_mode<synchronous>, transform_indices = @transform_7, window_bounds = array<i64: 1, 16>}, {pipeline_mode = #tpu.pipeline_mode<synchronous>, transform_indices = @transform_8, window_bounds = array<i64: 1, 16>}, {transform_indices = @transform_9, window_bounds = array<i64: 8, 16>}]} {
    %c0 = arith.constant 0 : index
    %c0_0 = arith.constant 0 : index
    %0 = vector.load %arg1[%c0, %c0_0] : memref<8x16xf32, #tpu.memory_space<vmem>>, vector<8x16xf32>
    %c0_1 = arith.constant 0 : index
    %c0_2 = arith.constant 0 : index
    %1 = vector.load %arg2[%c0_1, %c0_2] : memref<16x128xf32, #tpu.memory_space<vmem>>, vector<16x128xf32>
    %cst = arith.constant dense<0.000000e+00> : vector<8x128xf32>
    %2 = tpu.matmul %0, %1, %cst {dimension_numbers = #tpu.dot_dimension_numbers<[1], [0], [0], [1], [0, 0, 1, 1], [], []>} : vector<8x16xf32>, vector<16x128xf32>, vector<8x128xf32> -> vector<8x128xf32>
    %c0_3 = arith.constant 0 : index
    %c0_4 = arith.constant 0 : index
    %3 = vector.load %arg3[%c0_3, %c0_4] : memref<1x128xf32, #tpu.memory_space<vmem>>, vector<1x128xf32>
    %4 = vector.broadcast %3 : vector<1x128xf32> to vector<8x128xf32>
    %5 = arith.addf %2, %4 : vector<8x128xf32>
    %cst_5 = arith.constant 0.000000e+00 : f32
    %6 = vector.broadcast %cst_5 : f32 to vector<8x128xf32>
    %7 = arith.maximumf %5, %6 : vector<8x128xf32>
    %c0_6 = arith.constant 0 : index
    %c0_7 = arith.constant 0 : index
    %8 = vector.load %arg4[%c0_6, %c0_7] : memref<128x128xf32, #tpu.memory_space<vmem>>, vector<128x128xf32>
    %cst_8 = arith.constant dense<0.000000e+00> : vector<8x128xf32>
    %9 = tpu.matmul %7, %8, %cst_8 {dimension_numbers = #tpu.dot_dimension_numbers<[1], [0], [0], [1], [0, 0, 1, 1], [], []>} : vector<8x128xf32>, vector<128x128xf32>, vector<8x128xf32> -> vector<8x128xf32>
    %c0_9 = arith.constant 0 : index
    %c0_10 = arith.constant 0 : index
    %10 = vector.load %arg5[%c0_9, %c0_10] : memref<1x128xf32, #tpu.memory_space<vmem>>, vector<1x128xf32>
    %11 = vector.broadcast %10 : vector<1x128xf32> to vector<8x128xf32>
    %12 = arith.addf %9, %11 : vector<8x128xf32>
    %cst_11 = arith.constant 0.000000e+00 : f32
    %13 = vector.broadcast %cst_11 : f32 to vector<8x128xf32>
    %14 = arith.maximumf %12, %13 : vector<8x128xf32>
    %c0_12 = arith.constant 0 : index
    %c0_13 = arith.constant 0 : index
    %15 = vector.load %arg6[%c0_12, %c0_13] : memref<128x16xf32, #tpu.memory_space<vmem>>, vector<128x16xf32>
    %cst_14 = arith.constant dense<0.000000e+00> : vector<8x16xf32>
    %16 = tpu.matmul %14, %15, %cst_14 {dimension_numbers = #tpu.dot_dimension_numbers<[1], [0], [0], [1], [0, 0, 1, 1], [], []>} : vector<8x128xf32>, vector<128x16xf32>, vector<8x16xf32> -> vector<8x16xf32>
    %c0_15 = arith.constant 0 : index
    %c0_16 = arith.constant 0 : index
    %17 = vector.load %arg7[%c0_15, %c0_16] : memref<1x16xf32, #tpu.memory_space<vmem>>, vector<1x16xf32>
    %18 = vector.broadcast %17 : vector<1x16xf32> to vector<8x16xf32>
    %19 = arith.addf %16, %18 : vector<8x16xf32>
    %c0_17 = arith.constant 0 : index
    %c0_18 = arith.constant 0 : index
    %20 = vector.load %arg8[%c0_17, %c0_18] : memref<1x16xf32, #tpu.memory_space<vmem>>, vector<1x16xf32>
    %21 = vector.broadcast %20 : vector<1x16xf32> to vector<8x16xf32>
    %22 = arith.maximumf %19, %21 : vector<8x16xf32>
    %c0_19 = arith.constant 0 : index
    %c0_20 = arith.constant 0 : index
    %23 = vector.load %arg9[%c0_19, %c0_20] : memref<1x16xf32, #tpu.memory_space<vmem>>, vector<1x16xf32>
    %24 = vector.broadcast %23 : vector<1x16xf32> to vector<8x16xf32>
    %25 = arith.minimumf %22, %24 : vector<8x16xf32>
    %c0_21 = arith.constant 0 : index
    %c0_22 = arith.constant 0 : index
    %26 = vector.load %arg10[%c0_21, %c0_22] : memref<8x16xf32, #tpu.memory_space<vmem>>, vector<8x16xf32>
    tpu.vector_store %arg10[%c0_21, %c0_22], %25 {strides = array<i32>} : memref<8x16xf32, #tpu.memory_space<vmem>>, vector<8x16xf32>,
    return
  }
  func.func @transform_0(%arg0: i32) -> (i32, i32) {
    %c0_i32 = arith.constant 0 : i32
    %c0_i32_0 = arith.constant 0 : i32
    return %arg0, %c0_i32 : i32, i32
  }
  func.func @transform_1(%arg0: i32) -> (i32, i32) {
    %c0_i32 = arith.constant 0 : i32
    %c0_i32_0 = arith.constant 0 : i32
    %c0_i32_1 = arith.constant 0 : i32
    return %c0_i32, %c0_i32_0 : i32, i32
  }
  func.func @transform_2(%arg0: i32) -> (i32, i32) {
    %c0_i32 = arith.constant 0 : i32
    %c0_i32_0 = arith.constant 0 : i32
    %c0_i32_1 = arith.constant 0 : i32
    return %c0_i32, %c0_i32_0 : i32, i32
  }
  func.func @transform_3(%arg0: i32) -> (i32, i32) {
    %c0_i32 = arith.constant 0 : i32
    %c0_i32_0 = arith.constant 0 : i32
    %c0_i32_1 = arith.constant 0 : i32
    return %c0_i32, %c0_i32_0 : i32, i32
  }
  func.func @transform_4(%arg0: i32) -> (i32, i32) {
    %c0_i32 = arith.constant 0 : i32
    %c0_i32_0 = arith.constant 0 : i32
    %c0_i32_1 = arith.constant 0 : i32
    return %c0_i32, %c0_i32_0 : i32, i32
  }
  func.func @transform_5(%arg0: i32) -> (i32, i32) {
    %c0_i32 = arith.constant 0 : i32
    %c0_i32_0 = arith.constant 0 : i32
    %c0_i32_1 = arith.constant 0 : i32
    return %c0_i32, %c0_i32_0 : i32, i32
  }
  func.func @transform_6(%arg0: i32) -> (i32, i32) {
    %c0_i32 = arith.constant 0 : i32
    %c0_i32_0 = arith.constant 0 : i32
    %c0_i32_1 = arith.constant 0 : i32
    return %c0_i32, %c0_i32_0 : i32, i32
  }
  func.func @transform_7(%arg0: i32) -> (i32, i32) {
    %c0_i32 = arith.constant 0 : i32
    %c0_i32_0 = arith.constant 0 : i32
    %c0_i32_1 = arith.constant 0 : i32
    return %c0_i32, %c0_i32_0 : i32, i32
  }
  func.func @transform_8(%arg0: i32) -> (i32, i32) {
    %c0_i32 = arith.constant 0 : i32
    %c0_i32_0 = arith.constant 0 : i32
    %c0_i32_1 = arith.constant 0 : i32
    return %c0_i32, %c0_i32_0 : i32, i32
  }
  func.func @transform_9(%arg0: i32) -> (i32, i32) {
    %c0_i32 = arith.constant 0 : i32
    %c0_i32_0 = arith.constant 0 : i32
    return %arg0, %c0_i32 : i32, i32
  }
}

</mosaic_0001>

<llo_original>
// kernel: tpu_custom_call.1
$region0: #{tpu_custom_call.1}
  #allocation0 [shape = 'u32[]', space=smem, size = 0x4, offset = 0x4, fixed_abs, tag = 'smem constant byte address 0x4 - core index']
  #allocation1 [shape = 'u32[72,128]{1,0:T(1,128)}', space=vmem, size = 0x9000, scoped, tag = 'internal scratch']
  %s0 = inlined_call_operand.hbm [shape: f32[8,16], index: 0, kind: input, shape index: {}]
  %s1 = inlined_call_operand.vmem [shape: f32[16,128], index: 1, kind: input, shape index: {}]
  %s2 = inlined_call_operand.vmem [shape: f32[1,128], index: 2, kind: input, shape index: {}]
  %s3 = inlined_call_operand.vmem [shape: f32[128,128], index: 3, kind: input, shape index: {}]
  %s4 = inlined_call_operand.vmem [shape: f32[1,128], index: 4, kind: input, shape index: {}]
  %s5 = inlined_call_operand.vmem [shape: f32[128,16], index: 5, kind: input, shape index: {}]
  %s6 = inlined_call_operand.vmem [shape: f32[1,16], index: 6, kind: input, shape index: {}]
  %s7 = inlined_call_operand.vmem [shape: f32[1,16], index: 7, kind: input, shape index: {}]
  %s8 = inlined_call_operand.vmem [shape: f32[1,16], index: 8, kind: input, shape index: {}]
  %s9 = inlined_call_operand.hbm [shape: f32[8,16], index: 9, kind: output, shape index: {}]
  %s10 = sld [smem:[#allocation0]]
  $region50: #{tpu_custom_call.1} parent=0
    _
  %s12 = ssub.s32 1, %s10
  %s13 = scalar_select 0, %s12, %s10
  $region1: #{tpu_custom_call.1} parent=0
    #allocation2 [shape = 'u8[4096]{0}', space=vmem, size = 0x1000, scoped, tag = 'input window, operand 0, single buffered']
    #allocation3 [shape = 's32[1]{0}', space=sflag, size = 0x4, scoped, tag = 'scoped memory for tpu_custom_call.1']
    #allocation4 [shape = 's32[1]{0}', space=sflag, size = 0x4, scoped, tag = 'scoped memory for tpu_custom_call.1']
    #allocation5 [shape = 'u8[4096]{0}', space=vmem, size = 0x1000, scoped, tag = 'output window, operand 0, single buffered']
    %14 = vsyncpa [#allocation3], 0
    %15 = vsyncpa [#allocation4], 0
    // Predicated region
    $region2: #{tpu_custom_call.1} parent=1 // pred_check
      _
    $region3: #{tpu_custom_call.1} parent=1 // pred_check_branch
      %17 = sbr.rel (0) target = $region5
    $region4: #{tpu_custom_call.1} parent=1 // pred_region
      %19 = vsyncadd [#allocation3], 0
      %s21 = sshll.u32 %s0, 4
      %s22 = int_to_ptr.hbm [resolvable:$true] %s21
      %s23 = sshll.u32 [#allocation2], 4
      %s24 = int_to_ptr.vmem [resolvable:$true] %s23
      %26 = dma.hbm_to_vmem [thread:$0]  %s22, 128, %s24, [#allocation3]
    $region5: #{tpu_custom_call.1} parent=1 // pred_fallthru
      _
    // Predicated region
    $region6: #{tpu_custom_call.1} parent=1 // pred_check
      _
    $region7: #{tpu_custom_call.1} parent=1 // pred_check_branch
      %28 = sbr.rel (0) target = $region9
    $region8: #{tpu_custom_call.1} parent=1 // pred_region
      _
    $region9: #{tpu_custom_call.1} parent=1 // pred_fallthru
      _
    // Predicated region
    $region10: #{tpu_custom_call.1} parent=1 // pred_check
      _
    $region11: #{tpu_custom_call.1} parent=1 // pred_check_branch
      %30 = sbr.rel (0) target = $region13
    $region12: #{tpu_custom_call.1} parent=1 // pred_region
      _
    $region13: #{tpu_custom_call.1} parent=1 // pred_fallthru
      _
    // Predicated region
    $region14: #{tpu_custom_call.1} parent=1 // pred_check
      _
    $region15: #{tpu_custom_call.1} parent=1 // pred_check_branch
      %32 = sbr.rel (0) target = $region17
    $region16: #{tpu_custom_call.1} parent=1 // pred_region
      _
    $region17: #{tpu_custom_call.1} parent=1 // pred_fallthru
      _
    // Predicated region
    $region18: #{tpu_custom_call.1} parent=1 // pred_check
      _
    $region19: #{tpu_custom_call.1} parent=1 // pred_check_branch
      %34 = sbr.rel (0) target = $region21
    $region20: #{tpu_custom_call.1} parent=1 // pred_region
      _
    $region21: #{tpu_custom_call.1} parent=1 // pred_fallthru
      _
    // Predicated region
    $region22: #{tpu_custom_call.1} parent=1 // pred_check
      _
    $region23: #{tpu_custom_call.1} parent=1 // pred_check_branch
      %36 = sbr.rel (0) target = $region25
    $region24: #{tpu_custom_call.1} parent=1 // pred_region
      _
    $region25: #{tpu_custom_call.1} parent=1 // pred_fallthru
      _
    // Predicated region
    $region26: #{tpu_custom_call.1} parent=1 // pred_check
      _
    $region27: #{tpu_custom_call.1} parent=1 // pred_check_branch
      %38 = sbr.rel (0) target = $region29
    $region28: #{tpu_custom_call.1} parent=1 // pred_region
      _
    $region29: #{tpu_custom_call.1} parent=1 // pred_fallthru
      _
    // Predicated region
    $region30: #{tpu_custom_call.1} parent=1 // pred_check
      _
    $region31: #{tpu_custom_call.1} parent=1 // pred_check_branch
      %40 = sbr.rel (0) target = $region33
    $region32: #{tpu_custom_call.1} parent=1 // pred_region
      _
    $region33: #{tpu_custom_call.1} parent=1 // pred_fallthru
      _
    // Predicated region
    $region34: #{tpu_custom_call.1} parent=1 // pred_check
      _
    $region35: #{tpu_custom_call.1} parent=1 // pred_check_branch
      %42 = sbr.rel (0) target = $region37
    $region36: #{tpu_custom_call.1} parent=1 // pred_region
      _
    $region37: #{tpu_custom_call.1} parent=1 // pred_fallthru
      _
    // Predicated region
    $region38: #{tpu_custom_call.1} parent=1 // pred_check
      _
    $region39: #{tpu_custom_call.1} parent=1 // pred_check_branch
      %44 = sbr.rel (0) target = $region41
    $region40: #{tpu_custom_call.1} parent=1 // pred_region
      %46 = dma.done [#allocation3], 128
    $region41: #{tpu_custom_call.1} parent=1 // pred_fallthru
      _
    %v47 = vld [vmem:[#allocation2] sm:$0xff]
    %v48 = vld [vmem:[%s1] sm:$0xff]
    %v49 = vld [vmem:[%s1 + $0x8] sm:$0xff]
    %v50 = vld [vmem:[%s2] sm:$0x1]
    %v52 = vperm.slane %v50, 0
    %vm54 = vcmask 130048
    %v56 = vsel %vm54, %v47, 0
    %58 = vmatpush.msra.mxu0 0.0
    %59 = vmatpush.msra.mxu0 0.0
    %60 = vmatpush.msra.mxu0 0.0
    %61 = vmatpush.msra.mxu0 0.0
    %62 = vmatpush.msra.mxu0 0.0
    %63 = vmatpush.msra.mxu0 0.0
    %64 = vmatpush.msra.mxu0 0.0
    %65 = vmatpush.msra.mxu0 0.0
    %66 = vmatpush.msra.mxu0 0.0
    %67 = vmatpush.msra.mxu0 0.0
    %68 = vmatpush.msra.mxu0 0.0
    %69 = vmatpush.msra.mxu0 0.0
    %70 = vmatpush.msra.mxu0 0.0
    %71 = vmatpush.msra.mxu0 0.0
    %72 = vmatpush.msra.mxu0 %v49
    %73 = vmatpush.msra.mxu0 %v48
    %74 = vmatmul.f32.gmra.mxu0 %v56
    %v75 = vpop.f32.mrf.mxu0
    %v76 = vadd.f32 %v52, %v75
    %77 = vdwg.mxu0
    %v78 = vmax.f32 %v76, 0.0
    %v79 = vld [vmem:[%s3] sm:$0xff]
    %v80 = vld [vmem:[%s3 + $0x8] sm:$0xff]
    %v81 = vld [vmem:[%s3 + $0x10] sm:$0xff]
    %v82 = vld [vmem:[%s3 + $0x18] sm:$0xff]
    %v83 = vld [vmem:[%s3 + $0x20] sm:$0xff]
    %v84 = vld [vmem:[%s3 + $0x28] sm:$0xff]
    %v85 = vld [vmem:[%s3 + $0x30] sm:$0xff]
    %v86 = vld [vmem:[%s3 + $0x38] sm:$0xff]
    %v87 = vld [vmem:[%s3 + $0x40] sm:$0xff]
    %v88 = vld [vmem:[%s3 + $0x48] sm:$0xff]
    %v89 = vld [vmem:[%s3 + $0x50] sm:$0xff]
    %v90 = vld [vmem:[%s3 + $0x58] sm:$0xff]
    %v91 = vld [vmem:[%s3 + $0x60] sm:$0xff]
    %v92 = vld [vmem:[%s3 + $0x68] sm:$0xff]
    %v93 = vld [vmem:[%s3 + $0x70] sm:$0xff]
    %v94 = vld [vmem:[%s3 + $0x78] sm:$0xff]
    %v95 = vld [vmem:[%s4] sm:$0x1]
    %v97 = vperm.slane %v95, 0
    %99 = vmatpush.msra.mxu0 %v94
    %100 = vmatpush.msra.mxu0 %v93
    %101 = vmatpush.msra.mxu0 %v92
    %102 = vmatpush.msra.mxu0 %v91
    %103 = vmatpush.msra.mxu0 %v90
    %104 = vmatpush.msra.mxu0 %v89
    %105 = vmatpush.msra.mxu0 %v88
    %106 = vmatpush.msra.mxu0 %v87
    %107 = vmatpush.msra.mxu0 %v86
    %108 = vmatpush.msra.mxu0 %v85
    %109 = vmatpush.msra.mxu0 %v84
    %110 = vmatpush.msra.mxu0 %v83
    %111 = vmatpush.msra.mxu0 %v82
    %112 = vmatpush.msra.mxu0 %v81
    %113 = vmatpush.msra.mxu0 %v80
    %114 = vmatpush.msra.mxu0 %v79
    %115 = vmatmul.f32.gmra.mxu0 %v78
    %v116 = vpop.f32.mrf.mxu0
    %v117 = vadd.f32 %v97, %v116
    %118 = vdwg.mxu0
    %v119 = vmax.f32 %v117, 0.0
    %v120 = vld [vmem:[%s5] sm:$0xff]
    %v121 = vld [vmem:[%s5 + $0x8] sm:$0xff]
    %v122 = vld [vmem:[%s5 + $0x10] sm:$0xff]
    %v123 = vld [vmem:[%s5 + $0x18] sm:$0xff]
    %v124 = vld [vmem:[%s5 + $0x20] sm:$0xff]
    %v125 = vld [vmem:[%s5 + $0x28] sm:$0xff]
    %v126 = vld [vmem:[%s5 + $0x30] sm:$0xff]
    %v127 = vld [vmem:[%s5 + $0x38] sm:$0xff]
    %v128 = vld [vmem:[%s5 + $0x40] sm:$0xff]
    %v129 = vld [vmem:[%s5 + $0x48] sm:$0xff]
    %v130 = vld [vmem:[%s5 + $0x50] sm:$0xff]
    %v131 = vld [vmem:[%s5 + $0x58] sm:$0xff]
    %v132 = vld [vmem:[%s5 + $0x60] sm:$0xff]
    %v133 = vld [vmem:[%s5 + $0x68] sm:$0xff]
    %v134 = vld [vmem:[%s5 + $0x70] sm:$0xff]
    %v135 = vld [vmem:[%s5 + $0x78] sm:$0xff]
    %v136 = vld [vmem:[%s6] sm:$0x1]
    %v138 = vperm.slane %v136, 0
    %140 = vmatpush.msra.mxu0 %v135
    %141 = vmatpush.msra.mxu0 %v134
    %142 = vmatpush.msra.mxu0 %v133
    %143 = vmatpush.msra.mxu0 %v132
    %144 = vmatpush.msra.mxu0 %v131
    %145 = vmatpush.msra.mxu0 %v130
    %146 = vmatpush.msra.mxu0 %v129
    %147 = vmatpush.msra.mxu0 %v128
    %148 = vmatpush.msra.mxu0 %v127
    %149 = vmatpush.msra.mxu0 %v126
    %150 = vmatpush.msra.mxu0 %v125
    %151 = vmatpush.msra.mxu0 %v124
    %152 = vmatpush.msra.mxu0 %v123
    %153 = vmatpush.msra.mxu0 %v122
    %154 = vmatpush.msra.mxu0 %v121
    %155 = vmatpush.msra.mxu0 %v120
    %156 = vmatmul.f32.gmra.mxu0 %v119
    %v157 = vpop.f32.mrf.mxu0
    %v158 = vadd.f32 %v138, %v157
    %159 = vdwg.mxu0
    %v160 = vld [vmem:[%s7] sm:$0x1]
    %v162 = vperm.slane %v160, 0
    %v164 = vmax.f32 %v158, %v162
    %v165 = vld [vmem:[%s8] sm:$0x1]
    %v167 = vperm.slane %v165, 0
    %v169 = vmin.f32 %v164, %v167
    %170 = vst.msk [vmem:[#allocation5] sm:$0xff] %vm54, %v169
    // Predicated region
    $region42: #{tpu_custom_call.1} parent=1 // pred_check
      _
    $region43: #{tpu_custom_call.1} parent=1 // pred_check_branch
      %172 = sbr.rel (0) target = $region45
    $region44: #{tpu_custom_call.1} parent=1 // pred_region
      %174 = vsyncadd [#allocation4], 0
      %s176 = sshll.u32 [#allocation5], 4
      %s177 = int_to_ptr.vmem [resolvable:$true] %s176
      %s178 = sshll.u32 %s9, 4
      %s179 = int_to_ptr.hbm [resolvable:$true] %s178
      %181 = dma.vmem_to_hbm [thread:$0]  %s177, 128, %s179, [#allocation4]
    $region45: #{tpu_custom_call.1} parent=1 // pred_fallthru
      _
    // Predicated region
    $region46: #{tpu_custom_call.1} parent=1 // pred_check
      _
    $region47: #{tpu_custom_call.1} parent=1 // pred_check_branch
      %183 = sbr.rel (0) target = $region49
    $region48: #{tpu_custom_call.1} parent=1 // pred_region
      %185 = dma.done [#allocation4], 128
    $region49: #{tpu_custom_call.1} parent=1 // pred_fallthru
      _
    %186 = vsyncpa [#allocation3], 1
    %187 = vsyncpa [#allocation4], 1

</llo_original>
